<compile_context>
chip_gen: v7x
topology: tpu7x:2x2x1
jax: 0.10.0
libtpu: 0.0.40
codegen_flags: <defaults>
</compile_context>

<pallas_src>
import functools

import jax
import jax.numpy as jnp
from jax.experimental import pallas as pl
from jax.experimental.pallas import tpu as pltpu

_LANE = 128


def _eldice_stats_kernel(x_ref, t_ref, o_ref, *, total_rows, ragged, sub):
    """Accumulate per-class [intersection, pred_sum, target_count] partial sums.

    x_ref: (C, TG, 128) logits (native dtype)
    t_ref: (1, TG, 128) integer labels (narrow or int32)
    o_ref: (3, C-1, sub, 128) f32 accumulator, VMEM-resident across the j axis.
    """
    j = pl.program_id(1)

    @pl.when(j == 0)
    def _init():
        o_ref[...] = jnp.zeros_like(o_ref)

    def accumulate(masked):
        x = x_ref[...]                                  # (C, TG, L) native dtype
        t = t_ref[0].astype(jnp.int32)                  # (TG, L)
        C, TG, L = x.shape

        if masked:
            # Tail tile only: rows >= total_rows - j*TG lie past the voxel grid
            # (their VMEM contents are undefined). Neutralize before any math.
            row = jax.lax.broadcasted_iota(jnp.int32, (TG, L), 0)
            valid = row < (total_rows - j * TG)
            x = jnp.where(valid[None], x, jnp.zeros_like(x))
            t = jnp.where(valid, t, -1)

        # Channel softmax. C is the major block axis, so max/sum over it are
        # elementwise across dense (TG, 128) vregs. max/subtract stay in the
        # input dtype (bf16-packed VPU on v6e/v7x); exp + normalization in f32.
        mx = jnp.max(x, axis=0)                               # (TG, L)
        ex = jnp.exp((x - mx[None]).astype(jnp.float32))      # (C, TG, L)  (EUP)
        denom = jnp.sum(ex, axis=0)                           # (TG, L)
        r = pl.reciprocal(denom, approx=True)                 # EUP vrcp
        r = r * (2.0 - denom * r)                             # Newton -> ~f32 exact

        # Class 0 never feeds the loss: only normalize channels 1..C-1.
        p1 = ex[1:] * r[None]                                 # (C-1, TG, L)
        if masked:
            p1 = jnp.where(valid[None], p1, 0.0)

        if sub > 1:
            ng = TG // sub
            p1v = p1.reshape(C - 1, ng, sub, L)
            tv = t.reshape(1, ng, sub, L)
            cls = jax.lax.broadcasted_iota(jnp.int32, (C - 1, 1, 1, L), 0) + 1
            onehot = (tv == cls).astype(jnp.float32)          # (C-1, ng, sub, L)
            inter = jnp.sum(p1v * onehot, axis=1)             # (C-1, sub, L)
            psum = jnp.sum(p1v, axis=1)
            tsum = jnp.sum(onehot, axis=1)
        else:
            cls = jax.lax.broadcasted_iota(jnp.int32, (C - 1, 1, L), 0) + 1
            onehot = (t[None] == cls).astype(jnp.float32)     # (C-1, TG, L)
            inter = jnp.sum(p1 * onehot, axis=1, keepdims=True)   # (C-1, 1, L)
            psum = jnp.sum(p1, axis=1, keepdims=True)
            tsum = jnp.sum(onehot, axis=1, keepdims=True)

        # Sublane/lane-dense accumulator, VMEM-resident across the whole j axis.
        o_ref[0, :, :, :] = o_ref[0, :, :, :] + inter
        o_ref[1, :, :, :] = o_ref[1, :, :, :] + psum
        o_ref[2, :, :, :] = o_ref[2, :, :, :] + tsum

    if ragged:
        last = pl.num_programs(1) - 1

        @pl.when(j != last)
        def _steady():
            accumulate(masked=False)

        @pl.when(j == last)
        def _tail():
            accumulate(masked=True)
    else:
        accumulate(masked=False)


def _vmem_budget_bytes():
    """Scoped-VMEM budget gated on the chip: 64 MiB on v5e/v6e, 32 MiB on v7x."""
    phys = None
    get_info = getattr(pltpu, "get_tpu_info", None)
    if get_info is not None:
        try:
            phys = int(getattr(get_info(), "vmem_capacity_bytes", 0)) or None
        except Exception:
            phys = None
    if phys is None:
        return 32 * 1024 * 1024          # conservative: fits every generation
    return min(phys // 2, 64 * 1024 * 1024)


def _pick_tile_rows(G, C, in_bytes, tile_rows, vmem_budget):
    """Rows (of 128 voxels) per grid step, sized to the chip's VMEM and, when
    possible, chosen to divide G so the ragged tail path never exists."""
    # Rough per-row footprint: double-buffered logit/label DMA blocks plus the
    # big in-flight temporaries (x - mx, ex, p1, onehot, misc f32).
    bytes_per_row = _LANE * (
        2 * C * in_bytes + 2 * 4        # pipelined x block + label block (widened)
        + C * in_bytes                  # shifted logits
        + 4 * (C + 2 * (C - 1) + 5))    # ex, p1, onehot, scalars (f32)
    budget_rows = int((vmem_budget * 3 // 4) // max(bytes_per_row, 1))
    max_tg = max(32, min(tile_rows, budget_rows))
    if G <= max_tg:
        return G, False
    # Prefer a multiple-of-32 tile that divides G exactly (>= 256 rows to stay on
    # the measured throughput plateau).
    cand = (max_tg // 32) * 32
    while cand >= 256:
        if G % cand == 0:
            return cand, False
        cand -= 32
    tg = max(32, (max_tg // 32) * 32)
    return tg, (G % tg) != 0


@functools.partial(jax.jit, static_argnames=("gamma", "tile_rows"))
def eldice_loss(x, target, gamma=0.5, tile_rows=1024):
    """x: (N, C, D, H, W) logits (f32/bf16); target: (N, D, H, W) integer labels."""
    N, C, D, H, W = x.shape
    M = D * H * W

    # Free (contiguous) collapses: no transpose, no dtype copy of the logits.
    x3 = x.reshape(N, C, M)

    # Labels keep the caller's narrow integer dtype (no extra HBM conversion pass);
    # anything non-integer / wider than 32 bit is normalized to int32.
    t_dtype = target.dtype
    if (not jnp.issubdtype(t_dtype, jnp.integer)) or jnp.dtype(t_dtype).itemsize > 4:
        t_dtype = jnp.int32
    t3 = target.reshape(N, 1, M).astype(t_dtype)

    # Pad (a real copy) only when the per-sample voxel count isn't lane-aligned.
    pad_m = (-M) % _LANE
    if pad_m:
        x3 = jnp.pad(x3, ((0, 0), (0, 0), (0, pad_m)))                      # zero logits
        t3 = jnp.pad(t3, ((0, 0), (0, 0), (0, pad_m)), constant_values=-1)  # no class
    G = (M + pad_m) // _LANE

    vmem_budget = _vmem_budget_bytes()
    tg, ragged = _pick_tile_rows(G, C, jnp.dtype(x.dtype).itemsize, tile_rows,
                                 vmem_budget)
    sub = 8 if tg % 8 == 0 else 1
    grid_j = pl.cdiv(G, tg)

    x4 = x3.reshape(N, C, G, _LANE)          # free reshape
    t4 = t3.reshape(N, 1, G, _LANE)          # free reshape

    kernel = functools.partial(_eldice_stats_kernel, total_rows=G, ragged=ragged,
                               sub=sub)

    stats = pl.pallas_call(
        kernel,
        out_shape=jax.ShapeDtypeStruct((N, 3, C - 1, sub, _LANE), jnp.float32),
        grid_spec=pltpu.PrefetchScalarGridSpec(
            num_scalar_prefetch=0,
            grid=(N, grid_j),
            in_specs=[
                pl.BlockSpec((None, C, tg, _LANE), lambda n, j: (n, 0, j, 0)),
                pl.BlockSpec((None, 1, tg, _LANE), lambda n, j: (n, 0, j, 0)),
            ],
            out_specs=pl.BlockSpec((None, 3, C - 1, sub, _LANE),
                                   lambda n, j: (n, 0, 0, 0, 0)),
        ),
        compiler_params=pltpu.CompilerParams(
            dimension_semantics=("parallel", "arbitrary"),
            vmem_limit_bytes=vmem_budget,
        ),
    )(x4, t4)

    # Tiny per-class finalization (glue).
    s = jnp.sum(stats, axis=(0, 3, 4))                      # (3, C-1)
    inter, psum, tsum = s[0], s[1], s[2]
    if pad_m:
        # Zero-logit padded voxels got a uniform 1/C softmax; remove their mass
        # (holds to ~1 ulp with the Newton-corrected approx reciprocal).
        psum = psum - (N * pad_m) / C

    smooth = 1.0
    dice = (2.0 * inter + smooth) / (psum + tsum + smooth)
    # Clamp: approx-reciprocal / analytic corrections can push dice a hair above
    # 1.0, which would NaN (-log(dice))**gamma.
    dice = jnp.clip(dice, 1e-8, 1.0)
    per_class = jnp.where(tsum != 0.0, (-jnp.log(dice)) ** gamma, 1.0 - dice)
    return jnp.sum(per_class) / (C - 1)


def _eldice_loss_ref(x, target, gamma=0.5):
    """Pure-JAX reference mirroring the PyTorch module."""
    smooth = 1.0
    pred = jax.nn.softmax(x.astype(jnp.float32), axis=1)
    C = x.shape[1]
    loss = 0.0
    for i in range(1, C):
        pred_i = pred[:, i]
        target_i = (target == i).astype(jnp.float32)
        intersect = jnp.sum(pred_i * target_i)
        union = jnp.sum(pred_i) + jnp.sum(target_i)
        dice = (2.0 * intersect + smooth) / (union + smooth)
        loss = loss + jnp.where(
            jnp.sum(target_i) != 0.0, (-jnp.log(dice)) ** gamma, 1.0 - dice)
    return loss / (C - 1)


if __name__ == "__main__":
    key = jax.random.PRNGKey(0)

    # Test 1: small lane-aligned volume (single tile, int32 labels).
    k1, k2, key = (*jax.random.split(key, 2), key)
    N, C, D, H, W = 2, 4, 4, 8, 8
    x = jax.random.normal(k1, (N, C, D, H, W), dtype=jnp.float32)
    target = jax.random.randint(k2, (N, D, H, W), 0, C, dtype=jnp.int32)
    loss = jax.block_until_ready(eldice_loss(x, target, gamma=0.5))
    ref = jax.block_until_ready(_eldice_loss_ref(x, target, gamma=0.5))
    assert jnp.allclose(loss, ref, rtol=1e-4, atol=1e-4), (loss, ref)

    # Test 2: multi-tile with a ragged tail (G=288 rows, 256-row tiles), narrow
    # int8 labels, sublane-dense accumulator path.
    k1, k2, key = (*jax.random.split(key, 2), key)
    N, C, D, H, W = 2, 4, 16, 48, 48
    x = jax.random.normal(k1, (N, C, D, H, W), dtype=jnp.float32)
    target = jax.random.randint(k2, (N, D, H, W), 0, C, dtype=jnp.int32).astype(jnp.int8)
    loss = jax.block_until_ready(eldice_loss(x, target, gamma=0.5, tile_rows=256))
    ref = jax.block_until_ready(_eldice_loss_ref(x, target, gamma=0.5))
    assert jnp.allclose(loss, ref, rtol=1e-4, atol=1e-4), (loss, ref)

    # Test 3: voxel count not lane-aligned (exercises the padding correction and
    # the empty-class 1-dice branch).
    k1, k2, key = (*jax.random.split(key, 2), key)
    N, C, D, H, W = 2, 4, 3, 5, 7
    x = jax.random.normal(k1, (N, C, D, H, W), dtype=jnp.float32)
    target = jax.random.randint(k2, (N, D, H, W), 0, C, dtype=jnp.int32)
    loss = jax.block_until_ready(eldice_loss(x, target, gamma=0.5))
    ref = jax.block_until_ready(_eldice_loss_ref(x, target, gamma=0.5))
    assert jnp.allclose(loss, ref, rtol=1e-4, atol=1e-4), (loss, ref)

    print("KERNEL_OK")
</pallas_src>

<mosaic_0001>
module attributes {stable_mosaic.version = 11 : i64} {
  func.func @_eldice_stats_kernel(%arg0: i32, %arg1: i32, %arg2: memref<1x4x2x128xf32, #tpu.memory_space<vmem>>, %arg3: memref<1x1x2x128xi32, #tpu.memory_space<vmem>>, %arg4: memref<1x3x3x1x128xf32, #tpu.memory_space<vmem>>) attributes {dimension_semantics = [#tpu.dimension_semantics<parallel>, #tpu.dimension_semantics<arbitrary>], iteration_bounds = array<i64: 2, 1>, scalar_prefetch = 0 : i64, scratch_operands = 0 : i64, tpu.core_type = #tpu.core_type<tc>, window_params = [{transform_indices = @transform_0, window_bounds = array<i64: 1, 4, 2, 128>}, {transform_indices = @transform_1, window_bounds = array<i64: 1, 1, 2, 128>}, {transform_indices = @transform_2, window_bounds = array<i64: 1, 3, 3, 1, 128>}]} {
    %c0_i32 = arith.constant 0 : i32
    %0 = arith.cmpi eq, %arg1, %c0_i32 : i32
    %1 = arith.extui %0 : i1 to i32
    %c0_i32_0 = arith.constant 0 : i32
    %2 = arith.cmpi ne, %1, %c0_i32_0 : i32
    scf.if %2 {
      %cst_41 = arith.constant 0.000000e+00 : f32
      %56 = vector.broadcast %cst_41 : f32 to vector<3x3x1x128xf32>
      %c0_42 = arith.constant 0 : index
      %c0_43 = arith.constant 0 : index
      %c0_44 = arith.constant 0 : index
      %c0_45 = arith.constant 0 : index
      %c0_46 = arith.constant 0 : index
      %57 = vector.load %arg4[%c0_42, %c0_43, %c0_44, %c0_45, %c0_46] : memref<1x3x3x1x128xf32, #tpu.memory_space<vmem>>, vector<1x3x3x1x128xf32>
      %58 = vector.shape_cast %57 : vector<1x3x3x1x128xf32> to vector<3x3x1x128xf32>
      %59 = vector.shape_cast %56 : vector<3x3x1x128xf32> to vector<1x3x3x1x128xf32>
      tpu.vector_store %arg4[%c0_42, %c0_43, %c0_44, %c0_45, %c0_46], %59 {strides = array<i32>} : memref<1x3x3x1x128xf32, #tpu.memory_space<vmem>>, vector<1x3x3x1x128xf32>,
    } else {
    }
    %c0 = arith.constant 0 : index
    %c0_1 = arith.constant 0 : index
    %c0_2 = arith.constant 0 : index
    %c0_3 = arith.constant 0 : index
    %3 = vector.load %arg2[%c0, %c0_1, %c0_2, %c0_3] : memref<1x4x2x128xf32, #tpu.memory_space<vmem>>, vector<1x4x2x128xf32>
    %4 = vector.shape_cast %3 : vector<1x4x2x128xf32> to vector<4x2x128xf32>
    %c0_4 = arith.constant 0 : index
    %c0_5 = arith.constant 0 : index
    %c0_6 = arith.constant 0 : index
    %c0_7 = arith.constant 0 : index
    %5 = vector.load %arg3[%c0_4, %c0_5, %c0_6, %c0_7] : memref<1x1x2x128xi32, #tpu.memory_space<vmem>>, vector<1x1x2x128xi32>
    %6 = vector.shape_cast %5 : vector<1x1x2x128xi32> to vector<2x128xi32>
    %cst = arith.constant dense<0xFF800000> : vector<2x128xf32>
    %7 = vector.multi_reduction <maximumf>, %4, %cst [0] : vector<4x2x128xf32> to vector<2x128xf32>
    %8 = vector.shape_cast %7 : vector<2x128xf32> to vector<1x2x128xf32>
    %9 = vector.broadcast %8 : vector<1x2x128xf32> to vector<4x2x128xf32>
    %10 = arith.subf %4, %9 : vector<4x2x128xf32>
    %11 = math.exp %10 : vector<4x2x128xf32>
    %cst_8 = arith.constant dense<0.000000e+00> : vector<2x128xf32>
    %12 = vector.multi_reduction <add>, %11, %cst_8 [0] : vector<4x2x128xf32> to vector<2x128xf32>
    %13 = tpu.reciprocal %12 {approx = true} : vector<2x128xf32> -> vector<2x128xf32>
    %14 = arith.mulf %12, %13 : vector<2x128xf32>
    %cst_9 = arith.constant 2.000000e+00 : f32
    %15 = vector.broadcast %cst_9 : f32 to vector<2x128xf32>
    %16 = arith.subf %15, %14 : vector<2x128xf32>
    %17 = arith.mulf %13, %16 : vector<2x128xf32>
    %18 = vector.extract_strided_slice %11 {offsets = [1, 0, 0], sizes = [3, 2, 128], strides = [1, 1, 1]} : vector<4x2x128xf32> to vector<3x2x128xf32>
    %19 = vector.shape_cast %17 : vector<2x128xf32> to vector<1x2x128xf32>
    %20 = vector.broadcast %19 : vector<1x2x128xf32> to vector<3x2x128xf32>
    %21 = arith.mulf %18, %20 : vector<3x2x128xf32>
    %22 = tpu.iota {dimensions = array<i32: 0>} : vector<3x1x128xi32>
    %c1_i32 = arith.constant 1 : i32
    %23 = vector.broadcast %c1_i32 : i32 to vector<3x1x128xi32>
    %24 = arith.addi %22, %23 : vector<3x1x128xi32>
    %25 = vector.shape_cast %6 : vector<2x128xi32> to vector<1x2x128xi32>
    %26 = vector.broadcast %25 : vector<1x2x128xi32> to vector<3x2x128xi32>
    %27 = vector.broadcast %24 : vector<3x1x128xi32> to vector<3x2x128xi32>
    %28 = arith.cmpi eq, %26, %27 : vector<3x2x128xi32>
    %29 = arith.extui %28 : vector<3x2x128xi1> to vector<3x2x128xi32>
    %30 = arith.sitofp %29 : vector<3x2x128xi32> to vector<3x2x128xf32>
    %31 = arith.mulf %21, %30 : vector<3x2x128xf32>
    %cst_10 = arith.constant dense<0.000000e+00> : vector<3x128xf32>
    %32 = vector.multi_reduction <add>, %31, %cst_10 [1] : vector<3x2x128xf32> to vector<3x128xf32>
    %33 = vector.shape_cast %32 : vector<3x128xf32> to vector<3x1x128xf32>
    %cst_11 = arith.constant dense<0.000000e+00> : vector<3x128xf32>
    %34 = vector.multi_reduction <add>, %21, %cst_11 [1] : vector<3x2x128xf32> to vector<3x128xf32>
    %35 = vector.shape_cast %34 : vector<3x128xf32> to vector<3x1x128xf32>
    %cst_12 = arith.constant dense<0.000000e+00> : vector<3x128xf32>
    %36 = vector.multi_reduction <add>, %30, %cst_12 [1] : vector<3x2x128xf32> to vector<3x128xf32>
    %37 = vector.shape_cast %36 : vector<3x128xf32> to vector<3x1x128xf32>
    %c0_13 = arith.constant 0 : index
    %c0_14 = arith.constant 0 : index
    %c0_15 = arith.constant 0 : index
    %c0_16 = arith.constant 0 : index
    %c0_17 = arith.constant 0 : index
    %38 = vector.load %arg4[%c0_13, %c0_14, %c0_15, %c0_16, %c0_17] : memref<1x3x3x1x128xf32, #tpu.memory_space<vmem>>, vector<1x1x3x1x128xf32>
    %39 = vector.shape_cast %38 : vector<1x1x3x1x128xf32> to vector<3x1x128xf32>
    %40 = arith.addf %39, %33 : vector<3x1x128xf32>
    %c0_18 = arith.constant 0 : index
    %c0_19 = arith.constant 0 : index
    %c0_20 = arith.constant 0 : index
    %c0_21 = arith.constant 0 : index
    %c0_22 = arith.constant 0 : index
    %41 = vector.load %arg4[%c0_18, %c0_19, %c0_20, %c0_21, %c0_22] : memref<1x3x3x1x128xf32, #tpu.memory_space<vmem>>, vector<1x1x3x1x128xf32>
    %42 = vector.shape_cast %41 : vector<1x1x3x1x128xf32> to vector<3x1x128xf32>
    %43 = vector.shape_cast %40 : vector<3x1x128xf32> to vector<1x1x3x1x128xf32>
    tpu.vector_store %arg4[%c0_18, %c0_19, %c0_20, %c0_21, %c0_22], %43 {strides = array<i32>} : memref<1x3x3x1x128xf32, #tpu.memory_space<vmem>>, vector<1x1x3x1x128xf32>,
    %c0_23 = arith.constant 0 : index
    %c1 = arith.constant 1 : index
    %c0_24 = arith.constant 0 : index
    %c0_25 = arith.constant 0 : index
    %c0_26 = arith.constant 0 : index
    %44 = vector.load %arg4[%c0_23, %c1, %c0_24, %c0_25, %c0_26] : memref<1x3x3x1x128xf32, #tpu.memory_space<vmem>>, vector<1x1x3x1x128xf32>
    %45 = vector.shape_cast %44 : vector<1x1x3x1x128xf32> to vector<3x1x128xf32>
    %46 = arith.addf %45, %35 : vector<3x1x128xf32>
    %c0_27 = arith.constant 0 : index
    %c1_28 = arith.constant 1 : index
    %c0_29 = arith.constant 0 : index
    %c0_30 = arith.constant 0 : index
    %c0_31 = arith.constant 0 : index
    %47 = vector.load %arg4[%c0_27, %c1_28, %c0_29, %c0_30, %c0_31] : memref<1x3x3x1x128xf32, #tpu.memory_space<vmem>>, vector<1x1x3x1x128xf32>
    %48 = vector.shape_cast %47 : vector<1x1x3x1x128xf32> to vector<3x1x128xf32>
    %49 = vector.shape_cast %46 : vector<3x1x128xf32> to vector<1x1x3x1x128xf32>
    tpu.vector_store %arg4[%c0_27, %c1_28, %c0_29, %c0_30, %c0_31], %49 {strides = array<i32>} : memref<1x3x3x1x128xf32, #tpu.memory_space<vmem>>, vector<1x1x3x1x128xf32>,
    %c0_32 = arith.constant 0 : index
    %c2 = arith.constant 2 : index
    %c0_33 = arith.constant 0 : index
    %c0_34 = arith.constant 0 : index
    %c0_35 = arith.constant 0 : index
    %50 = vector.load %arg4[%c0_32, %c2, %c0_33, %c0_34, %c0_35] : memref<1x3x3x1x128xf32, #tpu.memory_space<vmem>>, vector<1x1x3x1x128xf32>
    %51 = vector.shape_cast %50 : vector<1x1x3x1x128xf32> to vector<3x1x128xf32>
    %52 = arith.addf %51, %37 : vector<3x1x128xf32>
    %c0_36 = arith.constant 0 : index
    %c2_37 = arith.constant 2 : index
    %c0_38 = arith.constant 0 : index
    %c0_39 = arith.constant 0 : index
    %c0_40 = arith.constant 0 : index
    %53 = vector.load %arg4[%c0_36, %c2_37, %c0_38, %c0_39, %c0_40] : memref<1x3x3x1x128xf32, #tpu.memory_space<vmem>>, vector<1x1x3x1x128xf32>
    %54 = vector.shape_cast %53 : vector<1x1x3x1x128xf32> to vector<3x1x128xf32>
    %55 = vector.shape_cast %52 : vector<3x1x128xf32> to vector<1x1x3x1x128xf32>
    tpu.vector_store %arg4[%c0_36, %c2_37, %c0_38, %c0_39, %c0_40], %55 {strides = array<i32>} : memref<1x3x3x1x128xf32, #tpu.memory_space<vmem>>, vector<1x1x3x1x128xf32>,
    return
  }
  func.func @transform_0(%arg0: i32, %arg1: i32) -> (i32, i32, i32, i32) {
    %c0_i32 = arith.constant 0 : i32
    %c0_i32_0 = arith.constant 0 : i32
    %c0_i32_1 = arith.constant 0 : i32
    return %arg0, %c0_i32, %arg1, %c0_i32_0 : i32, i32, i32, i32
  }
  func.func @transform_1(%arg0: i32, %arg1: i32) -> (i32, i32, i32, i32) {
    %c0_i32 = arith.constant 0 : i32
    %c0_i32_0 = arith.constant 0 : i32
    %c0_i32_1 = arith.constant 0 : i32
    return %arg0, %c0_i32, %arg1, %c0_i32_0 : i32, i32, i32, i32
  }
  func.func @transform_2(%arg0: i32, %arg1: i32) -> (i32, i32, i32, i32, i32) {
    %c0_i32 = arith.constant 0 : i32
    %c0_i32_0 = arith.constant 0 : i32
    %c0_i32_1 = arith.constant 0 : i32
    %c0_i32_2 = arith.constant 0 : i32
    %c0_i32_3 = arith.constant 0 : i32
    return %arg0, %c0_i32, %c0_i32_0, %c0_i32_1, %c0_i32_2 : i32, i32, i32, i32, i32
  }
}

</mosaic_0001>

<llo_original>
// kernel: eldice_loss.1
$region0: #{eldice_loss.1}
  #allocation0 [shape = 'u32[]', space=smem, size = 0x4, offset = 0x4, fixed_abs, tag = 'smem constant byte address 0x4 - core index']
  #allocation1 [shape = 'u32[144,128]{1,0:T(1,128)}', space=vmem, size = 0x12000, scoped, tag = 'internal scratch']
  %s0 = inlined_call_operand.vmem [shape: f32[2,4,2,128], index: 0, kind: input, shape index: {}]
  %s1 = inlined_call_operand.vmem [shape: s32[2,1,2,128], index: 1, kind: input, shape index: {}]
  %s2 = inlined_call_operand.vmem [shape: f32[2,3,3,1,128], index: 2, kind: output, shape index: {}]
  %s3 = sld [smem:[#allocation0]]
  $region45: #{eldice_loss.1} parent=0
    _
  %s5 = ssub.s32 1, %s3
  %s6 = scalar_select 0, %s5, %s3
  loop: start=0, step=1, limit=4
  $region2: #{eldice_loss.1} parent=0 // loop_pre_header
    _
  $region3: #{eldice_loss.1} parent=0 // loop_header
    %s8 = sphi 0, %s12
    %p9 = scmp.ge.s32.totalorder %s8, 4
    %s15 = sphi 0, %s27
    %s16 = sphi 0, %s23
    %s17 = sphi 0, %s15
    %s18 = sphi 0, %s16
    %s19 = sphi 0, %s17
    %s20 = sphi 0, %s18
    %s32 = sphi 0, %s34
    %s35 = sphi 0, %s32
    %s36 = sphi 0, %s35
    %s52 = sphi 0, %s36
    %s60 = sphi 0, %s62
    %s63 = sphi 0, %s60
    %s64 = sphi 0, %s63
    %s80 = sphi 0, %s64
    %s86 = sphi 0, %s88
    %s89 = sphi 0, %s86
    %s90 = sphi 0, %s89
    %s106 = sphi 0, %s90
  $region4: #{eldice_loss.1} parent=0 // loop_header_branch
    %11 = sbr.rel (%p9) target = $region8
  $region5: #{eldice_loss.1} parent=0 // loop_body
    %s13 = ssub.s32 %s8, 1
    %s14 = ssub.s32 %s8, 2
    %s21 = sadd.s32 1, %s16
    %p22 = scmp.ge.s32.totalorder %s21, 1
    %s23 = scalar_select %p22, 0, %s21
    %s24 = sadd.s32 1, %s15
    %s25 = scalar_select %p22, %s24, %s15
    %p26 = scmp.ge.s32.totalorder %s25, 2
    %s27 = scalar_select %p26, 0, %s25
    %s28 = ssub.s32 %s15, %s27
    %s29 = ssub.s32 %s16, %s23
    %s30 = sor.u32 %s28, %s29
    %p31 = scmp.eq.s32.totalorder %s30, 0
    %s33 = sadd.s32 %s32, 1
    %s34 = scalar_select %p31, %s32, %s33
    %p37 = pneg %p31
    %p38 = scmp.eq.s32.totalorder %s8, 1
    %p39 = por %p37, %p38
    %p40 = scmp.ne.s32.totalorder %s32, %s35
    %p41 = scmp.eq.s32.totalorder %s8, 0
    %p42 = por %p40, %p41
    %p43 = scmp.ne.s32.totalorder %s32, %s35
    %p44 = scmp.eq.s32.totalorder %s13, 1
    %p45 = por %p43, %p44
    %p46 = scmp.ne.s32.totalorder %s35, %s36
    %p47 = scmp.eq.s32.totalorder %s13, 0
    %p48 = por %p46, %p47
    %p49 = scmp.ne.s32.totalorder %s35, %s36
    %p50 = scmp.eq.s32.totalorder %s14, 1
    %p51 = por %p49, %p50
    %p53 = scmp.ne.s32.totalorder %s36, %s52
    %p54 = scmp.eq.s32.totalorder %s14, 0
    %p55 = por %p53, %p54
    %s56 = ssub.s32 %s15, %s27
    %s57 = ssub.s32 %s16, %s23
    %s58 = sor.u32 %s56, %s57
    %p59 = scmp.eq.s32.totalorder %s58, 0
    %s61 = sadd.s32 %s60, 1
    %s62 = scalar_select %p59, %s60, %s61
    %p65 = pneg %p59
    %p66 = scmp.eq.s32.totalorder %s8, 1
    %p67 = por %p65, %p66
    %p68 = scmp.ne.s32.totalorder %s60, %s63
    %p69 = scmp.eq.s32.totalorder %s8, 0
    %p70 = por %p68, %p69
    %p71 = scmp.ne.s32.totalorder %s60, %s63
    %p72 = scmp.eq.s32.totalorder %s13, 1
    %p73 = por %p71, %p72
    %p74 = scmp.ne.s32.totalorder %s63, %s64
    %p75 = scmp.eq.s32.totalorder %s13, 0
    %p76 = por %p74, %p75
    %p77 = scmp.ne.s32.totalorder %s63, %s64
    %p78 = scmp.eq.s32.totalorder %s14, 1
    %p79 = por %p77, %p78
    %p81 = scmp.ne.s32.totalorder %s64, %s80
    %p82 = scmp.eq.s32.totalorder %s14, 0
    %p83 = por %p81, %p82
    %s84 = ssub.s32 %s15, %s27
    %p85 = scmp.eq.s32.totalorder %s84, 0
    %s87 = sadd.s32 %s86, 1
    %s88 = scalar_select %p85, %s86, %s87
    %p91 = pneg %p85
    %p92 = scmp.eq.s32.totalorder %s8, 1
    %p93 = por %p91, %p92
    %p94 = scmp.ne.s32.totalorder %s86, %s89
    %p95 = scmp.eq.s32.totalorder %s8, 0
    %p96 = por %p94, %p95
    %p97 = scmp.ne.s32.totalorder %s86, %s89
    %p98 = scmp.eq.s32.totalorder %s13, 1
    %p99 = por %p97, %p98
    %p100 = scmp.ne.s32.totalorder %s89, %s90
    %p101 = scmp.eq.s32.totalorder %s13, 0
    %p102 = por %p100, %p101
    %p103 = scmp.ne.s32.totalorder %s89, %s90
    %p104 = scmp.eq.s32.totalorder %s14, 1
    %p105 = por %p103, %p104
    %p107 = scmp.ne.s32.totalorder %s90, %s106
    %p108 = scmp.eq.s32.totalorder %s14, 0
    %p109 = por %p107, %p108
    %p110 = scmp.le.s32.totalorder 1, %s8
    %p111 = scmp.lt.s32.totalorder %s8, 3
    %p112 = pnand %p110, %p111
    %p113 = pneg %p112
    // Predicated region
    $region9: #{eldice_loss.1} parent=5 // pred_check
      _
    $region10: #{eldice_loss.1} parent=5 // pred_check_branch
      %115 = sbr.rel (%p112) target = $region12
    $region11: #{eldice_loss.1} parent=5 // pred_region
      %s116 = ssub.s32 %s8, 1
    $region12: #{eldice_loss.1} parent=5 // pred_fallthru
      _
    %p117 = scmp.lt.s32.totalorder %s8, 2
    // Predicated region
    $region13: #{eldice_loss.1} parent=5 // pred_check
      %p118 = pneg %p117
    $region14: #{eldice_loss.1} parent=5 // pred_check_branch
      %120 = sbr.rel (%p118) target = $region16
    $region15: #{eldice_loss.1} parent=5 // pred_region
      // Predicated region
      $region17: #{eldice_loss.1} parent=15 // pred_check
        %p121 = pneg %p42
      $region18: #{eldice_loss.1} parent=15 // pred_check_branch
        %123 = sbr.rel (%p121) target = $region20
      $region19: #{eldice_loss.1} parent=15 // pred_region
        %p124 = scmp.lt.s32.totalorder %s15, 1
        %s125 = scalar_select %p124, %s15, 1
        %p126 = scmp.lt.s32.totalorder %s16, 0
        %s127 = scalar_select %p126, %s16, 0
        %s128 = smul.addr %s125, 4
        %s129 = sadd.s32 %s127, %s128
        %s130 = smul.addr %s129, 2
        %s131 = scalar_lea.vmem %s0, %s130
      $region20: #{eldice_loss.1} parent=15 // pred_fallthru
        _
      // Predicated region
      $region21: #{eldice_loss.1} parent=15 // pred_check
        %p132 = pneg %p70
      $region22: #{eldice_loss.1} parent=15 // pred_check_branch
        %134 = sbr.rel (%p132) target = $region24
      $region23: #{eldice_loss.1} parent=15 // pred_region
        %p135 = scmp.lt.s32.totalorder %s15, 1
        %s136 = scalar_select %p135, %s15, 1
        %p137 = scmp.lt.s32.totalorder %s16, 0
        %s138 = scalar_select %p137, %s16, 0
        %s139 = sadd.s32 %s138, %s136
        %s140 = smul.addr %s139, 2
        %s141 = scalar_lea.vmem %s1, %s140
      $region24: #{eldice_loss.1} parent=15 // pred_fallthru
        _
    $region16: #{eldice_loss.1} parent=5 // pred_fallthru
      _
    %p142 = scmp.le.s32.totalorder 1, %s8
    %p143 = scmp.lt.s32.totalorder %s8, 3
    %p144 = pnand %p142, %p143
    %p145 = pneg %p144
    // Predicated region
    $region25: #{eldice_loss.1} parent=5 // pred_check
      _
    $region26: #{eldice_loss.1} parent=5 // pred_check_branch
      %147 = sbr.rel (%p144) target = $region28
    $region27: #{eldice_loss.1} parent=5 // pred_region
      %s148 = ssub.s32 %s8, 1
      %p149 = scmp.lt.s32.totalorder %s17, 1
      %s150 = scalar_select %p149, %s17, 1
      %p151 = scmp.lt.s32.totalorder %s18, 0
      %s152 = scalar_select %p151, %s18, 0
      %s153 = smul.addr %s150, 4
      %s154 = sadd.s32 %s152, %s153
      %s155 = smul.addr %s154, 2
      %s156 = scalar_lea.vmem %s0, %s155
      %p157 = pneg %p48
      %p158 = pneg %p45
      %p159 = scmp.lt.s32.totalorder %s17, 1
      %s160 = scalar_select %p159, %s17, 1
      %p161 = scmp.lt.s32.totalorder %s18, 0
      %s162 = scalar_select %p161, %s18, 0
      %s163 = sadd.s32 %s162, %s160
      %s164 = smul.addr %s163, 2
      %s165 = scalar_lea.vmem %s1, %s164
      %p166 = pneg %p76
      %p167 = pneg %p73
      %p168 = pneg %p102
      %p169 = pneg %p99
      %p170 = scmp.lt.s32.totalorder %s17, 1
      %s171 = scalar_select %p170, %s17, 1
      %s172 = smul.addr %s171, 9
      %s173 = scalar_lea.vmem %s2, %s172
      %p174 = scmp.lt.s32.totalorder %s17, 1
      %s175 = scalar_select %p174, %s17, 1
      %p176 = scmp.lt.s32.totalorder %s18, 0
      %s177 = scalar_select %p176, %s18, 0
      %s178 = smul.addr %s175, 4
      %s179 = sadd.s32 %s177, %s178
      %s180 = smul.addr %s179, 2
      %s181 = scalar_lea.vmem %s0, %s180
      %p182 = scmp.lt.s32.totalorder %s17, 1
      %s183 = scalar_select %p182, %s17, 1
      %p184 = scmp.lt.s32.totalorder %s18, 0
      %s185 = scalar_select %p184, %s18, 0
      %s186 = sadd.s32 %s185, %s183
      %s187 = smul.addr %s186, 2
      %s188 = scalar_lea.vmem %s1, %s187
      %p189 = scmp.lt.s32.totalorder %s17, 1
      %s190 = scalar_select %p189, %s17, 1
      %s191 = smul.addr %s190, 9
      %s192 = scalar_lea.vmem %s2, %s191
      %p193 = scmp.eq.s32.totalorder %s18, 0
      // Predicated region
      $region29: #{eldice_loss.1} parent=27 // pred_check
        %p194 = pneg %p193
      $region30: #{eldice_loss.1} parent=27 // pred_check_branch
        %196 = sbr.rel (%p194) target = $region32
      $region31: #{eldice_loss.1} parent=27 // pred_region
        %197 = vst [vmem:[%s192] sm:$0x1] 0.0
        %198 = vst [vmem:[%s192 + $0x1] sm:$0x1] 0.0
        %199 = vst [vmem:[%s192 + $0x2] sm:$0x1] 0.0
        %200 = vst [vmem:[%s192 + $0x3] sm:$0x1] 0.0
        %201 = vst [vmem:[%s192 + $0x4] sm:$0x1] 0.0
        %202 = vst [vmem:[%s192 + $0x5] sm:$0x1] 0.0
        %203 = vst [vmem:[%s192 + $0x6] sm:$0x1] 0.0
        %204 = vst [vmem:[%s192 + $0x7] sm:$0x1] 0.0
        %205 = vst [vmem:[%s192 + $0x8] sm:$0x1] 0.0
      $region32: #{eldice_loss.1} parent=27 // pred_fallthru
        _
      %v206 = vld [vmem:[%s181] sm:$0x3]
      %v207 = vld [vmem:[%s181 + $0x2] sm:$0x3]
      %v208 = vld [vmem:[%s181 + $0x4] sm:$0x3]
      %v209 = vld [vmem:[%s181 + $0x6] sm:$0x3]
      %v210 = vld [vmem:[%s188] sm:$0x3]
      %vm211 = vcmask 1041408
      %v212 = vsel %vm211, %v206, -inf
      %v213 = vsel %vm211, %v207, -inf
      %v214 = vsel %vm211, %v208, -inf
      %v215 = vsel %vm211, %v209, -inf
      %v216 = vmax.f32 %v212, %v213
      %v217 = vmax.f32 %v214, %v215
      %v218 = vmax.f32 %v216, %v217
      %v219 = vsub.f32 %v206, %v218
      %v220 = vsub.f32 %v207, %v218
      %v221 = vsub.f32 %v208, %v218
      %v222 = vsub.f32 %v209, %v218
      %v223 = vmul.f32 %v219, 1.442695
      %v224 = vpow.pop %v223
      %v225 = vmul.f32 %v220, 1.442695
      %v226 = vpow.pop %v225
      %v227 = vmul.f32 %v221, 1.442695
      %v228 = vpow.pop %v227
      %v229 = vmul.f32 %v222, 1.442695
      %v230 = vpow.pop %v229
      %v231 = vsel %vm211, %v224, 0.0
      %v232 = vsel %vm211, %v226, 0.0
      %v233 = vadd.f32 %v231, %v232
      %v234 = vsel %vm211, %v228, 0.0
      %v235 = vadd.f32 %v233, %v234
      %v236 = vsel %vm211, %v230, 0.0
      %v237 = vadd.f32 %v235, %v236
      %v238 = vrcp.pop %v237
      %v239 = vmul.f32 %v237, %v238
      %v240 = vsub.f32 2.0, %v239
      %v241 = vmul.f32 %v238, %v240
      %v242 = vmul.f32 %v226, %v241
      %v243 = vmul.f32 %v228, %v241
      %v244 = vmul.f32 %v230, %v241
      %vm245 = vcmp.eq.s32.totalorder %v210, 1
      %vm246 = vcmp.eq.s32.totalorder %v210, 2
      %vm247 = vcmp.eq.s32.totalorder %v210, 3
      %v248 = vsel %vm245, 1, 0
      %v249 = vsel %vm246, 1, 0
      %v250 = vsel %vm247, 1, 0
      %v251 = vcvt.s32.f32 %v248
      %v252 = vcvt.s32.f32 %v249
      %v253 = vcvt.s32.f32 %v250
      %v254 = vmul.f32 %v242, %v251
      %v255 = vmul.f32 %v243, %v252
      %v256 = vmul.f32 %v244, %v253
      %v257 = vsel %vm211, %v254, 0.0
      %v258 = vrot.slane %v257, 4
      %v259 = vadd.f32 %v257, %v258
      %v260 = vrot.slane %v259, 2
      %v261 = vadd.f32 %v259, %v260
      %v262 = vrot.slane %v261, 1
      %v263 = vadd.f32 %v261, %v262
      %v264 = vsel %vm211, %v255, 0.0
      %v265 = vrot.slane %v264, 4
      %v266 = vadd.f32 %v264, %v265
      %v267 = vrot.slane %v266, 2
      %v268 = vadd.f32 %v266, %v267
      %v269 = vrot.slane %v268, 1
      %v270 = vadd.f32 %v268, %v269
      %v271 = vsel %vm211, %v256, 0.0
      %v272 = vrot.slane %v271, 4
      %v273 = vadd.f32 %v271, %v272
      %v274 = vrot.slane %v273, 2
      %v275 = vadd.f32 %v273, %v274
      %v276 = vrot.slane %v275, 1
      %v277 = vadd.f32 %v275, %v276
      %v278 = vsel %vm211, %v242, 0.0
      %v279 = vrot.slane %v278, 4
      %v280 = vadd.f32 %v278, %v279
      %v281 = vrot.slane %v280, 2
      %v282 = vadd.f32 %v280, %v281
      %v283 = vrot.slane %v282, 1
      %v284 = vadd.f32 %v282, %v283
      %v285 = vsel %vm211, %v243, 0.0
      %v286 = vrot.slane %v285, 4
      %v287 = vadd.f32 %v285, %v286
      %v288 = vrot.slane %v287, 2
      %v289 = vadd.f32 %v287, %v288
      %v290 = vrot.slane %v289, 1
      %v291 = vadd.f32 %v289, %v290
      %v292 = vsel %vm211, %v244, 0.0
      %v293 = vrot.slane %v292, 4
      %v294 = vadd.f32 %v292, %v293
      %v295 = vrot.slane %v294, 2
      %v296 = vadd.f32 %v294, %v295
      %v297 = vrot.slane %v296, 1
      %v298 = vadd.f32 %v296, %v297
      %v299 = vsel %vm211, %v251, 0.0
      %v300 = vrot.slane %v299, 4
      %v301 = vadd.f32 %v299, %v300
      %v302 = vrot.slane %v301, 2
      %v303 = vadd.f32 %v301, %v302
      %v304 = vrot.slane %v303, 1
      %v305 = vadd.f32 %v303, %v304
      %v306 = vsel %vm211, %v252, 0.0
      %v307 = vrot.slane %v306, 4
      %v308 = vadd.f32 %v306, %v307
      %v309 = vrot.slane %v308, 2
      %v310 = vadd.f32 %v308, %v309
      %v311 = vrot.slane %v310, 1
      %v312 = vadd.f32 %v310, %v311
      %v313 = vsel %vm211, %v253, 0.0
      %v314 = vrot.slane %v313, 4
      %v315 = vadd.f32 %v313, %v314
      %v316 = vrot.slane %v315, 2
      %v317 = vadd.f32 %v315, %v316
      %v318 = vrot.slane %v317, 1
      %v319 = vadd.f32 %v317, %v318
      %v320 = vld [vmem:[%s192] sm:$0x1]
      %v321 = vld [vmem:[%s192 + $0x1] sm:$0x1]
      %v322 = vld [vmem:[%s192 + $0x2] sm:$0x1]
      %v323 = vadd.f32 %v320, %v263
      %v324 = vadd.f32 %v321, %v270
      %v325 = vadd.f32 %v322, %v277
      %326 = vst [vmem:[%s192] sm:$0x1] %v323
      %327 = vst [vmem:[%s192 + $0x1] sm:$0x1] %v324
      %328 = vst [vmem:[%s192 + $0x2] sm:$0x1] %v325
      %s329 = scalar_lea.vmem %s192, 3
      %v330 = vld [vmem:[%s329] sm:$0x1]
      %v331 = vld [vmem:[%s329 + $0x1] sm:$0x1]
      %v332 = vld [vmem:[%s329 + $0x2] sm:$0x1]
      %v333 = vadd.f32 %v330, %v284
      %v334 = vadd.f32 %v331, %v291
      %v335 = vadd.f32 %v332, %v298
      %336 = vst [vmem:[%s329] sm:$0x1] %v333
      %337 = vst [vmem:[%s329 + $0x1] sm:$0x1] %v334
      %338 = vst [vmem:[%s329 + $0x2] sm:$0x1] %v335
      %s339 = scalar_lea.vmem %s192, 6
      %v340 = vld [vmem:[%s339] sm:$0x1]
      %v341 = vld [vmem:[%s339 + $0x1] sm:$0x1]
      %v342 = vld [vmem:[%s339 + $0x2] sm:$0x1]
      %v343 = vadd.f32 %v340, %v305
      %v344 = vadd.f32 %v341, %v312
      %v345 = vadd.f32 %v342, %v319
      %346 = vst [vmem:[%s339] sm:$0x1] %v343
      %347 = vst [vmem:[%s339 + $0x1] sm:$0x1] %v344
      %348 = vst [vmem:[%s339 + $0x2] sm:$0x1] %v345
      %p349 = scmp.lt.s32.totalorder %s17, 1
      %s350 = scalar_select %p349, %s17, 1
      %s351 = smul.addr %s350, 9
      %s352 = scalar_lea.vmem %s2, %s351
      // Predicated region
      $region33: #{eldice_loss.1} parent=27 // pred_check
        %p353 = pneg %p99
      $region34: #{eldice_loss.1} parent=27 // pred_check_branch
        %355 = sbr.rel (%p353) target = $region36
      $region35: #{eldice_loss.1} parent=27 // pred_region
        _
      $region36: #{eldice_loss.1} parent=27 // pred_fallthru
        _
    $region28: #{eldice_loss.1} parent=5 // pred_fallthru
      _
    %p356 = scmp.le.s32.totalorder 2, %s8
    // Predicated region
    $region37: #{eldice_loss.1} parent=5 // pred_check
      %p357 = pneg %p356
    $region38: #{eldice_loss.1} parent=5 // pred_check_branch
      %359 = sbr.rel (%p357) target = $region40
    $region39: #{eldice_loss.1} parent=5 // pred_region
      %s360 = ssub.s32 %s8, 2
      // Predicated region
      $region41: #{eldice_loss.1} parent=39 // pred_check
        %p361 = pneg %p105
      $region42: #{eldice_loss.1} parent=39 // pred_check_branch
        %363 = sbr.rel (%p361) target = $region44
      $region43: #{eldice_loss.1} parent=39 // pred_region
        %p364 = scmp.lt.s32.totalorder %s19, 1
        %s365 = scalar_select %p364, %s19, 1
        %s366 = smul.addr %s365, 9
        %s367 = scalar_lea.vmem %s2, %s366
      $region44: #{eldice_loss.1} parent=39 // pred_fallthru
        _
    $region40: #{eldice_loss.1} parent=5 // pred_fallthru
      _
  $region6: #{eldice_loss.1} parent=0 // loop_footer
    %s12 = sadd.s32 1, %s8
  $region7: #{eldice_loss.1} parent=0 // loop_footer_branch
    %7 = sbr.rel target = $region3
  $region8: #{eldice_loss.1} parent=0 // loop_exit
    _

</llo_original>
